<compile_context>
chip_gen: v7x
topology: tpu7x:2x2x1
jax: 0.10.0
libtpu: 0.0.40
codegen_flags: <defaults>
</compile_context>

<pallas_src>
import numpy as np
import jax
import jax.numpy as jnp
from jax.experimental import pallas as pl
from jax.experimental.pallas import tpu as pltpu

LANE = 128
_TARGET_BLOCK_BYTES = 2 << 20       # ~2 MiB per pipelined block
_SINGLE_BLOCK_BYTES = 2 << 20       # small tensors: one whole-array block


def _copy_kernel(x_ref, o_ref):
    # Pure data movement: copy the current VMEM tile.
    o_ref[...] = x_ref[...]


def _min_sublanes(dtype):
    # Native sublane tile: 8 rows for 4-byte, 16 for 2-byte, 32 for 1-byte.
    itemsize = jnp.dtype(dtype).itemsize
    return max(8, 32 // itemsize)


def _pick_lane_width(total, itemsize, min_sub):
    """Widest power-of-two multiple of 128 dividing `total`, such that
    (a) a min_sub-row block stays under the block-byte target and
    (b) at least min_sub rows remain, keeping sublanes dense."""
    cap = max(LANE,
              (_TARGET_BLOCK_BYTES // (min_sub * itemsize)) // LANE * LANE)
    lw = LANE
    while (total % (lw * 2) == 0
           and lw * 2 <= cap
           and total // (lw * 2) >= min_sub):
        lw *= 2
    return lw


def _whole_block_copy(arr2d):
    # Single whole-array block in VMEM (only used for small arrays / tail).
    return pl.pallas_call(
        _copy_kernel,
        out_shape=jax.ShapeDtypeStruct(arr2d.shape, arr2d.dtype),
    )(arr2d)


def _tiled_copy_flat(flat, total):
    """Lane-dense, pipelined identity copy of a flat buffer (total % 128 == 0)."""
    dtype = flat.dtype
    itemsize = jnp.dtype(dtype).itemsize
    min_sub = _min_sublanes(dtype)
    lane_w = _pick_lane_width(total, itemsize, min_sub)
    rows = total // lane_w
    row_bytes = lane_w * itemsize
    x2d = flat.reshape(rows, lane_w)

    if rows * row_bytes <= _SINGLE_BLOCK_BYTES:
        # Small tensor: one block covering the full array (full dims allowed).
        tr = rows
        grid = (1,)
    else:
        tr = max(min_sub,
                 (_TARGET_BLOCK_BYTES // row_bytes) // min_sub * min_sub)
        grid = (pl.cdiv(rows, tr),)

    out2d = pl.pallas_call(
        _copy_kernel,
        out_shape=jax.ShapeDtypeStruct((rows, lane_w), dtype),
        grid_spec=pltpu.PrefetchScalarGridSpec(
            num_scalar_prefetch=0,
            grid=grid,
            in_specs=[pl.BlockSpec((tr, lane_w), lambda i: (i, 0))],
            out_specs=pl.BlockSpec((tr, lane_w), lambda i: (i, 0)),
        ),
        compiler_params=pltpu.CompilerParams(
            dimension_semantics=("parallel",),
        ),
    )(x2d)
    return out2d.reshape(total)


def pallas_view(x, size):
    """Reproduces `tensor.reshape(size)` with the copy done in a Pallas kernel."""
    total = int(np.prod(x.shape))

    # Resolve a single -1 in `size` (PyTorch reshape semantics).
    if isinstance(size, int):
        size = (size,)
    size = tuple(int(s) for s in size)
    if -1 in size:
        known = int(np.prod([s for s in size if s != -1]))
        size = tuple(total // known if s == -1 else s for s in size)
    assert int(np.prod(size)) == total, "reshape size mismatch"

    flat = x.reshape(total)

    if total == 0:
        # Degenerate empty tensor: metadata-only result, nothing to copy.
        return flat.reshape(size)

    if total % LANE == 0:
        out_flat = _tiled_copy_flat(flat, total)
    else:
        # Copy the largest 128-divisible prefix through the tiled path; only
        # the small (<128 elem) tail goes through a tiny untiled block.
        prefix = (total // LANE) * LANE
        tail = total - prefix
        if prefix == 0:
            out_flat = _whole_block_copy(flat.reshape(1, total)).reshape(total)
        else:
            head = _tiled_copy_flat(flat[:prefix], prefix)
            tail_out = _whole_block_copy(
                flat[prefix:].reshape(1, tail)).reshape(tail)
            out_flat = jnp.concatenate([head, tail_out])

    # Metadata-only reshape (glue) to the requested target shape.
    return out_flat.reshape(size)


if __name__ == "__main__":
    key = jax.random.PRNGKey(0)

    # NCHW-style input, as the PyTorch module would typically receive.
    x = jax.random.normal(key, (2, 4, 16, 16), dtype=jnp.float32)
    target_size = (2, -1)                     # View((2, -1)) -> (2, 1024)
    out = pallas_view(x, target_size)
    out = jax.block_until_ready(out)

    ref = x.reshape(2, -1)
    assert out.shape == ref.shape, (out.shape, ref.shape)
    assert out.dtype == ref.dtype
    np.testing.assert_array_equal(np.asarray(out), np.asarray(ref))

    # Exercise the tiled path with a larger, multi-block f32 tensor.
    z = jax.random.normal(jax.random.PRNGKey(2), (8, 512, 512), dtype=jnp.float32)
    out_z = jax.block_until_ready(pallas_view(z, (-1, 1024)))
    np.testing.assert_array_equal(np.asarray(out_z),
                                  np.asarray(z.reshape(-1, 1024)))

    # Exercise the non-%128 fallback path with a tiny tensor.
    y = jax.random.normal(jax.random.PRNGKey(1), (3, 5, 7), dtype=jnp.float32)
    out_y = jax.block_until_ready(pallas_view(y, (21, 5)))
    np.testing.assert_array_equal(np.asarray(out_y), np.asarray(y.reshape(21, 5)))

    print("KERNEL_OK")
</pallas_src>

<mosaic_0001>
module attributes {stable_mosaic.version = 11 : i64} {
  func.func @_copy_kernel(%arg0: i32, %arg1: memref<8x256xf32, #tpu.memory_space<vmem>>, %arg2: memref<8x256xf32, #tpu.memory_space<vmem>>) attributes {dimension_semantics = [#tpu.dimension_semantics<parallel>], iteration_bounds = array<i64: 1>, scalar_prefetch = 0 : i64, scratch_operands = 0 : i64, tpu.core_type = #tpu.core_type<tc>, window_params = [{transform_indices = @transform_0, window_bounds = array<i64: 8, 256>}, {transform_indices = @transform_1, window_bounds = array<i64: 8, 256>}]} {
    %c0 = arith.constant 0 : index
    %c0_0 = arith.constant 0 : index
    %0 = vector.load %arg1[%c0, %c0_0] : memref<8x256xf32, #tpu.memory_space<vmem>>, vector<8x256xf32>
    %c0_1 = arith.constant 0 : index
    %c0_2 = arith.constant 0 : index
    %1 = vector.load %arg2[%c0_1, %c0_2] : memref<8x256xf32, #tpu.memory_space<vmem>>, vector<8x256xf32>
    tpu.vector_store %arg2[%c0_1, %c0_2], %0 {strides = array<i32>} : memref<8x256xf32, #tpu.memory_space<vmem>>, vector<8x256xf32>,
    return
  }
  func.func @transform_0(%arg0: i32) -> (i32, i32) {
    %c0_i32 = arith.constant 0 : i32
    %c0_i32_0 = arith.constant 0 : i32
    return %arg0, %c0_i32 : i32, i32
  }
  func.func @transform_1(%arg0: i32) -> (i32, i32) {
    %c0_i32 = arith.constant 0 : i32
    %c0_i32_0 = arith.constant 0 : i32
    return %arg0, %c0_i32 : i32, i32
  }
}

</mosaic_0001>

<llo_original>
// kernel: tpu_custom_call.1
$region0: #{tpu_custom_call.1}
  #allocation0 [shape = 'u32[]', space=smem, size = 0x4, offset = 0x4, fixed_abs, tag = 'smem constant byte address 0x4 - core index']
  #allocation1 [shape = 'u32[144,128]{1,0:T(1,128)}', space=vmem, size = 0x12000, scoped, tag = 'internal scratch']
  %s0 = inlined_call_operand.hbm [shape: f32[8,256], index: 0, kind: input, shape index: {}]
  %s1 = inlined_call_operand.hbm [shape: f32[8,256], index: 1, kind: output, shape index: {}]
  %s2 = sld [smem:[#allocation0]]
  $region18: #{tpu_custom_call.1} parent=0
    _
  %s4 = ssub.s32 1, %s2
  %s5 = scalar_select 0, %s4, %s2
  $region1: #{tpu_custom_call.1} parent=0
    #allocation2 [shape = 'u8[8192]{0}', space=vmem, size = 0x2000, scoped, tag = 'input window, operand 0, single buffered']
    #allocation3 [shape = 's32[1]{0}', space=sflag, size = 0x4, scoped, tag = 'scoped memory for tpu_custom_call.1']
    #allocation4 [shape = 's32[1]{0}', space=sflag, size = 0x4, scoped, tag = 'scoped memory for tpu_custom_call.1']
    #allocation5 [shape = 'u8[8192]{0}', space=vmem, size = 0x2000, scoped, tag = 'output window, operand 0, single buffered']
    %6 = vsyncpa [#allocation3], 0
    %7 = vsyncpa [#allocation4], 0
    // Predicated region
    $region2: #{tpu_custom_call.1} parent=1 // pred_check
      _
    $region3: #{tpu_custom_call.1} parent=1 // pred_check_branch
      %9 = sbr.rel (0) target = $region5
    $region4: #{tpu_custom_call.1} parent=1 // pred_region
      %s11 = ssub.s32 256, 256
      %12 = vsyncadd [#allocation3], %s11
      %s14 = sshll.u32 [#allocation2], 4
      %s15 = int_to_ptr.vmem [resolvable:$true] %s14
      %17 = dma.hbm_to_vmem [thread:$0]  %s0, 256, %s15, [#allocation3]
    $region5: #{tpu_custom_call.1} parent=1 // pred_fallthru
      _
    // Predicated region
    $region6: #{tpu_custom_call.1} parent=1 // pred_check
      _
    $region7: #{tpu_custom_call.1} parent=1 // pred_check_branch
      %19 = sbr.rel (0) target = $region9
    $region8: #{tpu_custom_call.1} parent=1 // pred_region
      %20 = dma.done [#allocation3], 256
    $region9: #{tpu_custom_call.1} parent=1 // pred_fallthru
      _
    %v21 = vld [vmem:[#allocation2] sm:$0xff]
    %v22 = vld [vmem:[#allocation2 + $0x8] sm:$0xff]
    %23 = vst [vmem:[#allocation5] sm:$0xff] %v21
    %24 = vst [vmem:[#allocation5 + $0x8] sm:$0xff] %v22
    // Predicated region
    $region10: #{tpu_custom_call.1} parent=1 // pred_check
      _
    $region11: #{tpu_custom_call.1} parent=1 // pred_check_branch
      %26 = sbr.rel (0) target = $region13
    $region12: #{tpu_custom_call.1} parent=1 // pred_region
      %s28 = ssub.s32 256, 256
      %29 = vsyncadd [#allocation4], %s28
      %s31 = sshll.u32 [#allocation5], 4
      %s32 = int_to_ptr.vmem [resolvable:$true] %s31
      %34 = dma.vmem_to_hbm [thread:$0]  %s32, 256, %s1, [#allocation4]
    $region13: #{tpu_custom_call.1} parent=1 // pred_fallthru
      _
    // Predicated region
    $region14: #{tpu_custom_call.1} parent=1 // pred_check
      _
    $region15: #{tpu_custom_call.1} parent=1 // pred_check_branch
      %36 = sbr.rel (0) target = $region17
    $region16: #{tpu_custom_call.1} parent=1 // pred_region
      %37 = dma.done [#allocation4], 256
    $region17: #{tpu_custom_call.1} parent=1 // pred_fallthru
      _
    %38 = vsyncpa [#allocation3], 1
    %39 = vsyncpa [#allocation4], 1

</llo_original>
